<compile_context>
chip_gen: v7x
topology: tpu7x:2x2x1
jax: 0.10.0
libtpu: 0.0.40
codegen_flags: <defaults>
</compile_context>

<pallas_src>
import math
from functools import partial

import jax
import jax.numpy as jnp
from jax.experimental import pallas as pl
from jax.experimental.pallas import tpu as pltpu

_MAX_BATCH_TILE = 32  # cap on the statically-unrolled per-step batch loop


def _mp_convt1d_kernel(x_ref, w_ref, o_ref, *, K, Cp, stride, dilation, L_in, L1):
    """One batch tile per grid step.

    x_ref: (B, C_in, L_in)       input tile, native NCL layout (no pre-transpose)
    w_ref: (K*Cp, C_in)          pre-normalized, tap-fused, channel-padded weight
    o_ref: (stride, B, Cp, L1)   output tile (x.dtype)
    """
    B = x_ref.shape[0]
    w = w_ref[...]                       # loop-invariant; load once
    for b in range(B):                   # B is small & static
        # One MXU matmul covering all K taps for this batch element:
        #   z[k*Cp + c, l] = sum_ci w[ci, c, k] * x[b, ci, l]
        z = jnp.dot(w, x_ref[b], preferred_element_type=jnp.float32)  # (K*Cp, L_in)
        for r in range(stride):          # residue of the output position mod stride
            acc = None
            for k in range(K):
                q, rr = divmod(k * dilation, stride)  # out pos = (l + q)*stride + rr
                if rr != r:
                    continue
                tap = z[k * Cp:(k + 1) * Cp, :]       # sublane-aligned (Cp % 8 == 0)
                tap = jnp.pad(tap, ((0, 0), (q, L1 - L_in - q)))
                acc = tap if acc is None else acc + tap
            if acc is None:              # residue not covered by any tap
                acc = jnp.zeros((Cp, L1), jnp.float32)
            # single dense one-shot store per (residue, batch) — no RMW scatter
            o_ref[r, b] = acc.astype(o_ref.dtype)


def _padded_bytes(shape, itemsize):
    """Rough (8,128)-padded VMEM footprint of a block."""
    shape = tuple(int(s) for s in shape)
    if len(shape) < 2:
        shape = (1,) * (2 - len(shape)) + shape
    lead = 1
    for s in shape[:-2]:
        lead *= s
    sub = -(-shape[-2] // 8) * 8
    lane = -(-shape[-1] // 128) * 128
    return lead * sub * lane * itemsize


def _vmem_capacity_bytes():
    try:
        return int(pltpu.get_tpu_info().vmem_capacity_bytes)
    except Exception:
        return 64 * 2 ** 20  # conservative fallback (v7x per-core VMEM)


def _num_tensorcores():
    try:
        d = jax.devices()[0]
        for attr in ("num_cores", "core_count"):
            v = getattr(d, attr, None)
            if v:
                return int(v)
    except Exception:
        pass
    return 1


def _pick_batch_tile(N, est_fn, budget, prefer_multi_step):
    """Largest divisor B of N whose per-step VMEM estimate fits the budget.
    With >1 TensorCore (v7x) prefer keeping >= 2 grid steps so the 'parallel'
    grid axis can shard across cores; single-TC chips take the biggest tile."""
    divisors = [b for b in range(1, min(N, _MAX_BATCH_TILE) + 1) if N % b == 0]
    feasible = [b for b in divisors if est_fn(b) <= budget] or [1]
    if prefer_multi_step and N >= 2:
        multi = [b for b in feasible if N // b >= 2]
        if multi:
            return max(multi)
    return max(feasible)


def mp_conv_transpose1d(x, weight, gain=1.0, *, stride=1, dilation=1, padding=0,
                        groups=1, eps=1e-8):
    """Forward pass of MPConvTranspose1d (inference mode).

    x: (N, C_in, L_in), weight: (C_in, C_out, K)  ->  (N, C_out, L_out)
    """
    assert groups == 1  # TODO(synk): groups > 1 not implemented (module default is 1).
    # TODO(synk): training-mode in-place weight re-normalization (self.weight.copy_)
    #             is a stateful side effect with no clean Pallas equivalent; inference only.

    N, C_in, L_in = x.shape
    _, C_out, K = weight.shape
    L_out = (L_in - 1) * stride - 2 * padding + dilation * (K - 1) + 1
    L1 = L_in + (dilation * (K - 1)) // stride   # rows of the (L1, stride) decomposition
    Cp = -(-C_out // 8) * 8                      # sublane-aligned channel count

    # --- magnitude-preserving weight normalization (hoisted, done once) ---
    # torch: norm per input channel over (C_out, K); denom = eps + ||w_ci|| / sqrt(C_out*K)
    w32 = weight.astype(jnp.float32)                                  # (C_in, C_out, K)
    norm = jnp.sqrt(jnp.sum(w32 * w32, axis=(1, 2), keepdims=True))   # (C_in, 1, 1)
    fan = float(C_out * K)                                            # = weight[ci].numel()
    w32 = w32 / (eps + norm * (1.0 / math.sqrt(fan)))
    w32 = w32 * (gain / math.sqrt(fan))
    # tap-fused, channel-padded layout (K*Cp, C_in): row k*Cp + c  ==  w[:, c, k]
    wt = jnp.transpose(w32, (2, 1, 0))                                # (K, C_out, C_in)
    if Cp != C_out:
        wt = jnp.pad(wt, ((0, 0), (0, Cp - C_out), (0, 0)))
    wt = wt.reshape(K * Cp, C_in).astype(x.dtype)

    itemsize = jnp.dtype(x.dtype).itemsize

    def est(b):  # per-grid-step VMEM footprint (double-buffered blocks + temporaries)
        return (2 * _padded_bytes((b, C_in, L_in), itemsize)
                + 2 * _padded_bytes((K * Cp, C_in), itemsize)
                + 2 * _padded_bytes((stride * b, Cp, L1), itemsize)
                + _padded_bytes((K * Cp, L_in), 4)        # z intermediate (f32)
                + _padded_bytes((stride, Cp, L1), 4))     # residue accumulators (f32)

    cap = _vmem_capacity_bytes()
    B = _pick_batch_tile(N, est, cap // 3, prefer_multi_step=_num_tensorcores() > 1)
    NT = N // B
    vmem_limit = int(min(max(2 * est(B), 16 * 2 ** 20), int(cap * 0.9)))

    kernel = partial(_mp_convt1d_kernel, K=K, Cp=Cp, stride=stride,
                     dilation=dilation, L_in=L_in, L1=L1)

    cost = pl.CostEstimate(
        flops=int(2 * N * (K * Cp) * C_in * L_in),
        transcendentals=0,
        bytes_accessed=int(x.size * itemsize + wt.size * itemsize
                           + stride * N * Cp * L1 * itemsize),
    )

    acc = pl.pallas_call(
        kernel,
        out_shape=jax.ShapeDtypeStruct((stride, N, Cp, L1), x.dtype),
        grid_spec=pltpu.PrefetchScalarGridSpec(
            num_scalar_prefetch=0,
            grid=(NT,),
            in_specs=[
                pl.BlockSpec((B, C_in, L_in), lambda t: (t, 0, 0)),
                pl.BlockSpec((K * Cp, C_in), lambda t: (0, 0)),
            ],
            out_specs=pl.BlockSpec((stride, B, Cp, L1), lambda t: (0, t, 0, 0)),
        ),
        compiler_params=pltpu.CompilerParams(
            dimension_semantics=("parallel",),
            vmem_limit_bytes=vmem_limit,
        ),
        cost_estimate=cost,
    )(x, wt)

    # Fold the (L1, stride) decomposition back into the length axis and crop.
    # out[n, c, l*stride + r] = acc[r, n, c, l]
    if stride == 1:
        y_full = acc.reshape(N, Cp, L1)                        # free reshape
    else:
        # single XLA pass over the output (the input needed no transpose at all)
        y_full = jnp.transpose(acc, (1, 2, 3, 0)).reshape(N, Cp, L1 * stride)
    return y_full[:, :C_out, padding:padding + L_out]


def ref_mp_conv_transpose1d(x, weight, gain=1.0, *, stride, dilation, padding):
    """Pure-JAX reference mirroring the PyTorch module (groups=1)."""
    w = weight.astype(jnp.float32)                                   # (C_in, C_out, K)
    norm = jnp.sqrt(jnp.sum(w * w, axis=(1, 2), keepdims=True))
    fan = float(w.shape[1] * w.shape[2])
    w = w / (1e-8 + norm / math.sqrt(fan))
    w = w * (gain / math.sqrt(fan))
    w = w.astype(x.dtype)

    N, C_in, L_in = x.shape
    _, C_out, K = weight.shape
    L_full = (L_in - 1) * stride + dilation * (K - 1) + 1
    L_out = L_full - 2 * padding
    y = jnp.zeros((N, C_out, L_full), jnp.float32)
    for k in range(K):
        contrib = jnp.einsum('nil,io->nol', x.astype(jnp.float32),
                             w[:, :, k].astype(jnp.float32))
        y = y.at[:, :, k * dilation: k * dilation + (L_in - 1) * stride + 1: stride].add(contrib)
    return y[:, :, padding:padding + L_out].astype(x.dtype)


if __name__ == "__main__":
    key = jax.random.PRNGKey(0)
    kx, kw, kx2, kw2, kx3, kw3 = jax.random.split(key, 6)

    # config 1: upsampling transposed conv (stride 2, padding 1), module-like shapes
    N, C_in, C_out, K, L_in = 2, 8, 16, 4, 16
    stride, dilation, padding = 2, 1, 1
    x = jax.random.normal(kx, (N, C_in, L_in), dtype=jnp.float32)
    weight = jax.random.normal(kw, (C_in, C_out, K), dtype=jnp.float32)  # ~ torch.randn init
    y = jax.block_until_ready(
        mp_conv_transpose1d(x, weight, 1.0, stride=stride, dilation=dilation,
                            padding=padding, groups=1))
    y_ref = ref_mp_conv_transpose1d(x, weight, 1.0, stride=stride,
                                    dilation=dilation, padding=padding)
    L_out = (L_in - 1) * stride - 2 * padding + dilation * (K - 1) + 1
    assert y.shape == y_ref.shape == (N, C_out, L_out)
    assert jnp.allclose(y, y_ref, atol=1e-5, rtol=1e-5)

    # config 2: stride 1 / dilation 2, exercises batch tiling and the crop-only path
    N2, C2_in, C2_out, K2, L2 = 4, 16, 8, 3, 24
    s2, d2, p2 = 1, 2, 0
    x2 = jax.random.normal(kx2, (N2, C2_in, L2), dtype=jnp.float32)
    w2 = jax.random.normal(kw2, (C2_in, C2_out, K2), dtype=jnp.float32)
    y2 = jax.block_until_ready(
        mp_conv_transpose1d(x2, w2, 0.7, stride=s2, dilation=d2, padding=p2))
    y2_ref = ref_mp_conv_transpose1d(x2, w2, 0.7, stride=s2, dilation=d2, padding=p2)
    assert y2.shape == y2_ref.shape
    assert jnp.allclose(y2, y2_ref, atol=1e-5, rtol=1e-5)

    # config 3: stride 4, C_out not a multiple of 8 (channel padding), uncovered residues,
    #           odd L_in (no L_in alignment needed in this design)
    N3, C3_in, C3_out, K3, L3 = 2, 4, 12, 2, 9
    s3, d3, p3 = 4, 1, 0
    x3 = jax.random.normal(kx3, (N3, C3_in, L3), dtype=jnp.float32)
    w3 = jax.random.normal(kw3, (C3_in, C3_out, K3), dtype=jnp.float32)
    y3 = jax.block_until_ready(
        mp_conv_transpose1d(x3, w3, 1.3, stride=s3, dilation=d3, padding=p3))
    y3_ref = ref_mp_conv_transpose1d(x3, w3, 1.3, stride=s3, dilation=d3, padding=p3)
    assert y3.shape == y3_ref.shape
    assert jnp.allclose(y3, y3_ref, atol=1e-5, rtol=1e-5)

    print("KERNEL_OK")
</pallas_src>

<mosaic_0001>
module attributes {stable_mosaic.version = 11 : i64} {
  func.func @_mp_convt1d_kernel(%arg0: i32, %arg1: memref<2x8x16xf32, #tpu.memory_space<vmem>>, %arg2: memref<64x8xf32, #tpu.memory_space<vmem>>, %arg3: memref<2x2x16x17xf32, #tpu.memory_space<vmem>>) attributes {dimension_semantics = [#tpu.dimension_semantics<parallel>], iteration_bounds = array<i64: 1>, scalar_prefetch = 0 : i64, scratch_operands = 0 : i64, tpu.core_type = #tpu.core_type<tc>, window_params = [{transform_indices = @transform_0, window_bounds = array<i64: 2, 8, 16>}, {pipeline_mode = #tpu.pipeline_mode<synchronous>, transform_indices = @transform_1, window_bounds = array<i64: 64, 8>}, {transform_indices = @transform_2, window_bounds = array<i64: 2, 2, 16, 17>}]} {
    %c0 = arith.constant 0 : index
    %c0_0 = arith.constant 0 : index
    %0 = vector.load %arg2[%c0, %c0_0] : memref<64x8xf32, #tpu.memory_space<vmem>>, vector<64x8xf32>
    %c0_1 = arith.constant 0 : index
    %c0_2 = arith.constant 0 : index
    %c0_3 = arith.constant 0 : index
    %1 = vector.load %arg1[%c0_1, %c0_2, %c0_3] : memref<2x8x16xf32, #tpu.memory_space<vmem>>, vector<1x8x16xf32>
    %2 = vector.shape_cast %1 : vector<1x8x16xf32> to vector<8x16xf32>
    %cst = arith.constant dense<0.000000e+00> : vector<64x16xf32>
    %3 = tpu.matmul %0, %2, %cst {dimension_numbers = #tpu.dot_dimension_numbers<[1], [0], [0], [1], [0, 0, 1, 1], [], []>} : vector<64x8xf32>, vector<8x16xf32>, vector<64x16xf32> -> vector<64x16xf32>
    %4 = vector.extract_strided_slice %3 {offsets = [0, 0], sizes = [16, 16], strides = [1, 1]} : vector<64x16xf32> to vector<16x16xf32>
    %c0_i32 = arith.constant 0 : i32
    %5 = arith.sitofp %c0_i32 : i32 to f32
    %6 = vector.broadcast %5 : f32 to vector<16x1xf32>
    %7 = tpu.concatenate %4, %6 in 1 : vector<16x16xf32>, vector<16x1xf32> -> vector<16x17xf32>
    %8 = vector.extract_strided_slice %3 {offsets = [32, 0], sizes = [16, 16], strides = [1, 1]} : vector<64x16xf32> to vector<16x16xf32>
    %c0_i32_4 = arith.constant 0 : i32
    %9 = arith.sitofp %c0_i32_4 : i32 to f32
    %10 = vector.broadcast %9 : f32 to vector<16x1xf32>
    %11 = tpu.concatenate %10, %8 in 1 : vector<16x1xf32>, vector<16x16xf32> -> vector<16x17xf32>
    %12 = arith.addf %7, %11 : vector<16x17xf32>
    %c0_5 = arith.constant 0 : index
    %c0_6 = arith.constant 0 : index
    %c0_7 = arith.constant 0 : index
    %c0_8 = arith.constant 0 : index
    %13 = vector.load %arg3[%c0_5, %c0_6, %c0_7, %c0_8] : memref<2x2x16x17xf32, #tpu.memory_space<vmem>>, vector<1x1x16x17xf32>
    %14 = vector.shape_cast %13 : vector<1x1x16x17xf32> to vector<16x17xf32>
    %15 = vector.shape_cast %12 : vector<16x17xf32> to vector<1x1x16x17xf32>
    tpu.vector_store %arg3[%c0_5, %c0_6, %c0_7, %c0_8], %15 {strides = array<i32>} : memref<2x2x16x17xf32, #tpu.memory_space<vmem>>, vector<1x1x16x17xf32>,
    %16 = vector.extract_strided_slice %3 {offsets = [16, 0], sizes = [16, 16], strides = [1, 1]} : vector<64x16xf32> to vector<16x16xf32>
    %c0_i32_9 = arith.constant 0 : i32
    %17 = arith.sitofp %c0_i32_9 : i32 to f32
    %18 = vector.broadcast %17 : f32 to vector<16x1xf32>
    %19 = tpu.concatenate %16, %18 in 1 : vector<16x16xf32>, vector<16x1xf32> -> vector<16x17xf32>
    %20 = vector.extract_strided_slice %3 {offsets = [48, 0], sizes = [16, 16], strides = [1, 1]} : vector<64x16xf32> to vector<16x16xf32>
    %c0_i32_10 = arith.constant 0 : i32
    %21 = arith.sitofp %c0_i32_10 : i32 to f32
    %22 = vector.broadcast %21 : f32 to vector<16x1xf32>
    %23 = tpu.concatenate %22, %20 in 1 : vector<16x1xf32>, vector<16x16xf32> -> vector<16x17xf32>
    %24 = arith.addf %19, %23 : vector<16x17xf32>
    %c1 = arith.constant 1 : index
    %c0_11 = arith.constant 0 : index
    %c0_12 = arith.constant 0 : index
    %c0_13 = arith.constant 0 : index
    %25 = vector.load %arg3[%c1, %c0_11, %c0_12, %c0_13] : memref<2x2x16x17xf32, #tpu.memory_space<vmem>>, vector<1x1x16x17xf32>
    %26 = vector.shape_cast %25 : vector<1x1x16x17xf32> to vector<16x17xf32>
    %27 = vector.shape_cast %24 : vector<16x17xf32> to vector<1x1x16x17xf32>
    tpu.vector_store %arg3[%c1, %c0_11, %c0_12, %c0_13], %27 {strides = array<i32>} : memref<2x2x16x17xf32, #tpu.memory_space<vmem>>, vector<1x1x16x17xf32>,
    %c1_14 = arith.constant 1 : index
    %c0_15 = arith.constant 0 : index
    %c0_16 = arith.constant 0 : index
    %28 = vector.load %arg1[%c1_14, %c0_15, %c0_16] : memref<2x8x16xf32, #tpu.memory_space<vmem>>, vector<1x8x16xf32>
    %29 = vector.shape_cast %28 : vector<1x8x16xf32> to vector<8x16xf32>
    %cst_17 = arith.constant dense<0.000000e+00> : vector<64x16xf32>
    %30 = tpu.matmul %0, %29, %cst_17 {dimension_numbers = #tpu.dot_dimension_numbers<[1], [0], [0], [1], [0, 0, 1, 1], [], []>} : vector<64x8xf32>, vector<8x16xf32>, vector<64x16xf32> -> vector<64x16xf32>
    %31 = vector.extract_strided_slice %30 {offsets = [0, 0], sizes = [16, 16], strides = [1, 1]} : vector<64x16xf32> to vector<16x16xf32>
    %c0_i32_18 = arith.constant 0 : i32
    %32 = arith.sitofp %c0_i32_18 : i32 to f32
    %33 = vector.broadcast %32 : f32 to vector<16x1xf32>
    %34 = tpu.concatenate %31, %33 in 1 : vector<16x16xf32>, vector<16x1xf32> -> vector<16x17xf32>
    %35 = vector.extract_strided_slice %30 {offsets = [32, 0], sizes = [16, 16], strides = [1, 1]} : vector<64x16xf32> to vector<16x16xf32>
    %c0_i32_19 = arith.constant 0 : i32
    %36 = arith.sitofp %c0_i32_19 : i32 to f32
    %37 = vector.broadcast %36 : f32 to vector<16x1xf32>
    %38 = tpu.concatenate %37, %35 in 1 : vector<16x1xf32>, vector<16x16xf32> -> vector<16x17xf32>
    %39 = arith.addf %34, %38 : vector<16x17xf32>
    %c0_20 = arith.constant 0 : index
    %c1_21 = arith.constant 1 : index
    %c0_22 = arith.constant 0 : index
    %c0_23 = arith.constant 0 : index
    %40 = vector.load %arg3[%c0_20, %c1_21, %c0_22, %c0_23] : memref<2x2x16x17xf32, #tpu.memory_space<vmem>>, vector<1x1x16x17xf32>
    %41 = vector.shape_cast %40 : vector<1x1x16x17xf32> to vector<16x17xf32>
    %42 = vector.shape_cast %39 : vector<16x17xf32> to vector<1x1x16x17xf32>
    tpu.vector_store %arg3[%c0_20, %c1_21, %c0_22, %c0_23], %42 {strides = array<i32>} : memref<2x2x16x17xf32, #tpu.memory_space<vmem>>, vector<1x1x16x17xf32>,
    %43 = vector.extract_strided_slice %30 {offsets = [16, 0], sizes = [16, 16], strides = [1, 1]} : vector<64x16xf32> to vector<16x16xf32>
    %c0_i32_24 = arith.constant 0 : i32
    %44 = arith.sitofp %c0_i32_24 : i32 to f32
    %45 = vector.broadcast %44 : f32 to vector<16x1xf32>
    %46 = tpu.concatenate %43, %45 in 1 : vector<16x16xf32>, vector<16x1xf32> -> vector<16x17xf32>
    %47 = vector.extract_strided_slice %30 {offsets = [48, 0], sizes = [16, 16], strides = [1, 1]} : vector<64x16xf32> to vector<16x16xf32>
    %c0_i32_25 = arith.constant 0 : i32
    %48 = arith.sitofp %c0_i32_25 : i32 to f32
    %49 = vector.broadcast %48 : f32 to vector<16x1xf32>
    %50 = tpu.concatenate %49, %47 in 1 : vector<16x1xf32>, vector<16x16xf32> -> vector<16x17xf32>
    %51 = arith.addf %46, %50 : vector<16x17xf32>
    %c1_26 = arith.constant 1 : index
    %c1_27 = arith.constant 1 : index
    %c0_28 = arith.constant 0 : index
    %c0_29 = arith.constant 0 : index
    %52 = vector.load %arg3[%c1_26, %c1_27, %c0_28, %c0_29] : memref<2x2x16x17xf32, #tpu.memory_space<vmem>>, vector<1x1x16x17xf32>
    %53 = vector.shape_cast %52 : vector<1x1x16x17xf32> to vector<16x17xf32>
    %54 = vector.shape_cast %51 : vector<16x17xf32> to vector<1x1x16x17xf32>
    tpu.vector_store %arg3[%c1_26, %c1_27, %c0_28, %c0_29], %54 {strides = array<i32>} : memref<2x2x16x17xf32, #tpu.memory_space<vmem>>, vector<1x1x16x17xf32>,
    return
  }
  func.func @transform_0(%arg0: i32) -> (i32, i32, i32) {
    %c0_i32 = arith.constant 0 : i32
    %c0_i32_0 = arith.constant 0 : i32
    %c0_i32_1 = arith.constant 0 : i32
    return %arg0, %c0_i32, %c0_i32_0 : i32, i32, i32
  }
  func.func @transform_1(%arg0: i32) -> (i32, i32) {
    %c0_i32 = arith.constant 0 : i32
    %c0_i32_0 = arith.constant 0 : i32
    %c0_i32_1 = arith.constant 0 : i32
    return %c0_i32, %c0_i32_0 : i32, i32
  }
  func.func @transform_2(%arg0: i32) -> (i32, i32, i32, i32) {
    %c0_i32 = arith.constant 0 : i32
    %c0_i32_0 = arith.constant 0 : i32
    %c0_i32_1 = arith.constant 0 : i32
    %c0_i32_2 = arith.constant 0 : i32
    return %c0_i32, %arg0, %c0_i32_0, %c0_i32_1 : i32, i32, i32, i32
  }
}

</mosaic_0001>

<llo_original>
// kernel: tpu_custom_call.1
$region0: #{tpu_custom_call.1}
  #allocation0 [shape = 'u32[]', space=smem, size = 0x4, offset = 0x4, fixed_abs, tag = 'smem constant byte address 0x4 - core index']
  #allocation1 [shape = 'u32[144,128]{1,0:T(1,128)}', space=vmem, size = 0x12000, scoped, tag = 'internal scratch']
  %s0 = inlined_call_operand.vmem [shape: f32[2,8,16], index: 0, kind: input, shape index: {}]
  %s1 = inlined_call_operand.vmem [shape: f32[64,8], index: 1, kind: input, shape index: {}]
  %s2 = inlined_call_operand.hbm [shape: f32[2,2,16,17], index: 2, kind: output, shape index: {}]
  %s3 = sld [smem:[#allocation0]]
  $region18: #{tpu_custom_call.1} parent=0
    _
  %s5 = ssub.s32 1, %s3
  %s6 = scalar_select 0, %s5, %s3
  $region1: #{tpu_custom_call.1} parent=0
    #allocation2 [shape = 'u8[32768]{0}', space=vmem, size = 0x8000, scoped, tag = 'output window, operand 0, single buffered']
    #allocation3 [shape = 's32[1]{0}', space=sflag, size = 0x4, scoped, tag = 'scoped memory for tpu_custom_call.1']
    %7 = vsyncpa [#allocation3], 0
    // Predicated region
    $region2: #{tpu_custom_call.1} parent=1 // pred_check
      _
    $region3: #{tpu_custom_call.1} parent=1 // pred_check_branch
      %9 = sbr.rel (0) target = $region5
    $region4: #{tpu_custom_call.1} parent=1 // pred_region
      _
    $region5: #{tpu_custom_call.1} parent=1 // pred_fallthru
      _
    // Predicated region
    $region6: #{tpu_custom_call.1} parent=1 // pred_check
      _
    $region7: #{tpu_custom_call.1} parent=1 // pred_check_branch
      %11 = sbr.rel (0) target = $region9
    $region8: #{tpu_custom_call.1} parent=1 // pred_region
      _
    $region9: #{tpu_custom_call.1} parent=1 // pred_fallthru
      _
    %v12 = vld [vmem:[%s1] sm:$0xff]
    %v13 = vld [vmem:[%s1 + $0x8] sm:$0xff]
    %v14 = vld [vmem:[%s1 + $0x10] sm:$0xff]
    %v15 = vld [vmem:[%s1 + $0x18] sm:$0xff]
    %v16 = vld [vmem:[%s1 + $0x20] sm:$0xff]
    %v17 = vld [vmem:[%s1 + $0x28] sm:$0xff]
    %v18 = vld [vmem:[%s1 + $0x30] sm:$0xff]
    %v19 = vld [vmem:[%s1 + $0x38] sm:$0xff]
    %v20 = vld [vmem:[%s0] sm:$0xff]
    %vm21 = vcmask 64512
    %v23 = vsel %vm21, %v12, 0
    %v26 = vsel %vm21, %v13, 0
    %v29 = vsel %vm21, %v14, 0
    %v32 = vsel %vm21, %v15, 0
    %v35 = vsel %vm21, %v16, 0
    %v38 = vsel %vm21, %v17, 0
    %v41 = vsel %vm21, %v18, 0
    %v44 = vsel %vm21, %v19, 0
    %46 = vmatprep.subr.mxu0 0.0
    %47 = vmatpush1.msra.mxu0 %v20
    %48 = vmatprep.subr.mxu0 0.0
    %49 = vmatpush1.msra.mxu0 0.0
    %50 = vmatprep.subr.mxu0 0.0
    %51 = vmatpush1.msra.mxu0 0.0
    %52 = vmatprep.subr.mxu0 0.0
    %53 = vmatpush1.msra.mxu0 0.0
    %54 = vmatprep.subr.mxu0 0.0
    %55 = vmatpush1.msra.mxu0 0.0
    %56 = vmatprep.subr.mxu0 0.0
    %57 = vmatpush1.msra.mxu0 0.0
    %58 = vmatprep.subr.mxu0 0.0
    %59 = vmatpush1.msra.mxu0 0.0
    %60 = vmatprep.subr.mxu0 0.0
    %61 = vmatpush1.msra.mxu0 0.0
    %62 = vmatprep.subr.mxu0 0.0
    %63 = vmatpush1.msra.mxu0 0.0
    %64 = vmatprep.subr.mxu0 0.0
    %65 = vmatpush1.msra.mxu0 0.0
    %66 = vmatprep.subr.mxu0 0.0
    %67 = vmatpush1.msra.mxu0 0.0
    %68 = vmatprep.subr.mxu0 0.0
    %69 = vmatpush1.msra.mxu0 0.0
    %70 = vmatprep.subr.mxu0 0.0
    %71 = vmatpush1.msra.mxu0 0.0
    %72 = vmatprep.subr.mxu0 0.0
    %73 = vmatpush1.msra.mxu0 0.0
    %74 = vmatprep.subr.mxu0 0.0
    %75 = vmatpush1.msra.mxu0 0.0
    %76 = vmatprep.subr.mxu0 0.0
    %77 = vmatpush1.msra.mxu0 0.0
    %78 = vmatprep.subr.mxu0 0.0
    %79 = vmatpush1.msra.mxu0 0.0
    %80 = vmatprep.subr.mxu0 0.0
    %81 = vmatpush1.msra.mxu0 0.0
    %82 = vmatprep.subr.mxu0 0.0
    %83 = vmatpush1.msra.mxu0 0.0
    %84 = vmatprep.subr.mxu0 0.0
    %85 = vmatpush1.msra.mxu0 0.0
    %86 = vmatprep.subr.mxu0 0.0
    %87 = vmatpush1.msra.mxu0 0.0
    %88 = vmatprep.subr.mxu0 0.0
    %89 = vmatpush1.msra.mxu0 0.0
    %90 = vmatprep.subr.mxu0 0.0
    %91 = vmatpush1.msra.mxu0 0.0
    %92 = vmatprep.subr.mxu0 0.0
    %93 = vmatpush1.msra.mxu0 0.0
    %94 = vmatprep.subr.mxu0 0.0
    %95 = vmatpush1.msra.mxu0 0.0
    %96 = vmatprep.subr.mxu0 0.0
    %97 = vmatpush1.msra.mxu0 0.0
    %98 = vmatprep.subr.mxu0 0.0
    %99 = vmatpush1.msra.mxu0 0.0
    %100 = vmatprep.subr.mxu0 0.0
    %101 = vmatpush1.msra.mxu0 0.0
    %102 = vmatprep.subr.mxu0 0.0
    %103 = vmatpush1.msra.mxu0 0.0
    %104 = vmatprep.subr.mxu0 0.0
    %105 = vmatpush1.msra.mxu0 0.0
    %106 = vmatprep.subr.mxu0 0.0
    %107 = vmatpush1.msra.mxu0 0.0
    %108 = vmatprep.subr.mxu0 0.0
    %109 = vmatpush1.msra.mxu0 0.0
    %110 = vmatprep.mubr.f32.mxu0 0.0
    %111 = vmatmul.mubr.f32.gmra.mrb[0].mxu0 %v23
    %v112 = vpop.f32.mrb[0].mxu0
    %v113 = vadd.f32 0.0, %v112
    %v114 = vpop.f32.mrb[0].mxu0
    %115 = vmatprep.mubr.f32.mxu0 0.0
    %116 = vmatmul.mubr.f32.gmra.mrb[0].mxu0 %v26
    %v117 = vpop.f32.mrb[0].mxu0
    %v118 = vadd.f32 0.0, %v117
    %v119 = vpop.f32.mrb[0].mxu0
    %120 = vmatprep.mubr.f32.mxu0 0.0
    %121 = vmatmul.mubr.f32.gmra.mrb[0].mxu0 %v29
    %v122 = vpop.f32.mrb[0].mxu0
    %v123 = vadd.f32 0.0, %v122
    %v124 = vpop.f32.mrb[0].mxu0
    %125 = vmatprep.mubr.f32.mxu0 0.0
    %126 = vmatmul.mubr.f32.gmra.mrb[0].mxu0 %v32
    %v127 = vpop.f32.mrb[0].mxu0
    %v128 = vadd.f32 0.0, %v127
    %v129 = vpop.f32.mrb[0].mxu0
    %130 = vmatprep.mubr.f32.mxu0 0.0
    %131 = vmatmul.mubr.f32.gmra.mrb[0].mxu0 %v35
    %v132 = vpop.f32.mrb[0].mxu0
    %v133 = vadd.f32 0.0, %v132
    %v134 = vpop.f32.mrb[0].mxu0
    %135 = vmatprep.mubr.f32.mxu0 0.0
    %136 = vmatmul.mubr.f32.gmra.mrb[0].mxu0 %v38
    %v137 = vpop.f32.mrb[0].mxu0
    %v138 = vadd.f32 0.0, %v137
    %v139 = vpop.f32.mrb[0].mxu0
    %140 = vmatprep.mubr.f32.mxu0 0.0
    %141 = vmatmul.mubr.f32.gmra.mrb[0].mxu0 %v41
    %v142 = vpop.f32.mrb[0].mxu0
    %v143 = vadd.f32 0.0, %v142
    %v144 = vpop.f32.mrb[0].mxu0
    %145 = vmatprep.mubr.f32.mxu0 0.0
    %146 = vmatmul.mubr.f32.gmra.mrb[0].mxu0 %v44
    %v147 = vpop.f32.mrb[0].mxu0
    %v148 = vadd.f32 0.0, %v147
    %v149 = vpop.f32.mrb[0].mxu0
    %150 = vdwg.mxu0
    %vm151 = vcmask 130048
    %v152 = vsel %vm151, %v113, 0.0
    %v153 = vsel %vm151, %v118, 0.0
    %156 = vrot.lane.b32.xlu0 %v133, 1
    %v157 = vpop.permute.xlu0 %156
    %158 = vrot.lane.b32.xlu0 %v138, 1
    %v159 = vpop.permute.xlu0 %158
    %vm162 = vcmask 7168
    %v163 = vsel %vm162, 0.0, %v157
    %v164 = vsel %vm162, 0.0, %v159
    %v165 = vadd.f32 %v152, %v163
    %v166 = vadd.f32 %v153, %v164
    %vm167 = vcmask 138240
    %168 = vst.msk [vmem:[#allocation2] sm:$0xff] %vm167, %v165
    %169 = vst.msk [vmem:[#allocation2 + $0x8] sm:$0xff] %vm167, %v166
    %v170 = vsel %vm151, %v123, 0.0
    %v171 = vsel %vm151, %v128, 0.0
    %174 = vrot.lane.b32.xlu0 %v143, 1
    %v175 = vpop.permute.xlu0 %174
    %176 = vrot.lane.b32.xlu0 %v148, 1
    %v177 = vpop.permute.xlu0 %176
    %v180 = vsel %vm162, 0.0, %v175
    %v181 = vsel %vm162, 0.0, %v177
    %v182 = vadd.f32 %v170, %v180
    %v183 = vadd.f32 %v171, %v181
    %s184 = scalar_lea.vmem [#allocation2], 32
    %185 = vst.msk [vmem:[%s184] sm:$0xff] %vm167, %v182
    %186 = vst.msk [vmem:[%s184 + $0x8] sm:$0xff] %vm167, %v183
    %s187 = scalar_lea.vmem %s0, 8
    %v188 = vld [vmem:[%s187] sm:$0xff]
    %189 = vmatprep.subr.mxu0 0.0
    %190 = vmatpush1.msra.mxu0 %v188
    %191 = vmatprep.subr.mxu0 0.0
    %192 = vmatpush1.msra.mxu0 0.0
    %193 = vmatprep.subr.mxu0 0.0
    %194 = vmatpush1.msra.mxu0 0.0
    %195 = vmatprep.subr.mxu0 0.0
    %196 = vmatpush1.msra.mxu0 0.0
    %197 = vmatprep.subr.mxu0 0.0
    %198 = vmatpush1.msra.mxu0 0.0
    %199 = vmatprep.subr.mxu0 0.0
    %200 = vmatpush1.msra.mxu0 0.0
    %201 = vmatprep.subr.mxu0 0.0
    %202 = vmatpush1.msra.mxu0 0.0
    %203 = vmatprep.subr.mxu0 0.0
    %204 = vmatpush1.msra.mxu0 0.0
    %205 = vmatprep.subr.mxu0 0.0
    %206 = vmatpush1.msra.mxu0 0.0
    %207 = vmatprep.subr.mxu0 0.0
    %208 = vmatpush1.msra.mxu0 0.0
    %209 = vmatprep.subr.mxu0 0.0
    %210 = vmatpush1.msra.mxu0 0.0
    %211 = vmatprep.subr.mxu0 0.0
    %212 = vmatpush1.msra.mxu0 0.0
    %213 = vmatprep.subr.mxu0 0.0
    %214 = vmatpush1.msra.mxu0 0.0
    %215 = vmatprep.subr.mxu0 0.0
    %216 = vmatpush1.msra.mxu0 0.0
    %217 = vmatprep.subr.mxu0 0.0
    %218 = vmatpush1.msra.mxu0 0.0
    %219 = vmatprep.subr.mxu0 0.0
    %220 = vmatpush1.msra.mxu0 0.0
    %221 = vmatprep.subr.mxu0 0.0
    %222 = vmatpush1.msra.mxu0 0.0
    %223 = vmatprep.subr.mxu0 0.0
    %224 = vmatpush1.msra.mxu0 0.0
    %225 = vmatprep.subr.mxu0 0.0
    %226 = vmatpush1.msra.mxu0 0.0
    %227 = vmatprep.subr.mxu0 0.0
    %228 = vmatpush1.msra.mxu0 0.0
    %229 = vmatprep.subr.mxu0 0.0
    %230 = vmatpush1.msra.mxu0 0.0
    %231 = vmatprep.subr.mxu0 0.0
    %232 = vmatpush1.msra.mxu0 0.0
    %233 = vmatprep.subr.mxu0 0.0
    %234 = vmatpush1.msra.mxu0 0.0
    %235 = vmatprep.subr.mxu0 0.0
    %236 = vmatpush1.msra.mxu0 0.0
    %237 = vmatprep.subr.mxu0 0.0
    %238 = vmatpush1.msra.mxu0 0.0
    %239 = vmatprep.subr.mxu0 0.0
    %240 = vmatpush1.msra.mxu0 0.0
    %241 = vmatprep.subr.mxu0 0.0
    %242 = vmatpush1.msra.mxu0 0.0
    %243 = vmatprep.subr.mxu0 0.0
    %244 = vmatpush1.msra.mxu0 0.0
    %245 = vmatprep.subr.mxu0 0.0
    %246 = vmatpush1.msra.mxu0 0.0
    %247 = vmatprep.subr.mxu0 0.0
    %248 = vmatpush1.msra.mxu0 0.0
    %249 = vmatprep.subr.mxu0 0.0
    %250 = vmatpush1.msra.mxu0 0.0
    %251 = vmatprep.subr.mxu0 0.0
    %252 = vmatpush1.msra.mxu0 0.0
    %253 = vmatprep.mubr.f32.mxu0 0.0
    %254 = vmatmul.mubr.f32.gmra.mrb[0].mxu0 %v23
    %v255 = vpop.f32.mrb[0].mxu0
    %v256 = vadd.f32 0.0, %v255
    %v257 = vpop.f32.mrb[0].mxu0
    %258 = vmatprep.mubr.f32.mxu0 0.0
    %259 = vmatmul.mubr.f32.gmra.mrb[0].mxu0 %v26
    %v260 = vpop.f32.mrb[0].mxu0
    %v261 = vadd.f32 0.0, %v260
    %v262 = vpop.f32.mrb[0].mxu0
    %263 = vmatprep.mubr.f32.mxu0 0.0
    %264 = vmatmul.mubr.f32.gmra.mrb[0].mxu0 %v29
    %v265 = vpop.f32.mrb[0].mxu0
    %v266 = vadd.f32 0.0, %v265
    %v267 = vpop.f32.mrb[0].mxu0
    %268 = vmatprep.mubr.f32.mxu0 0.0
    %269 = vmatmul.mubr.f32.gmra.mrb[0].mxu0 %v32
    %v270 = vpop.f32.mrb[0].mxu0
    %v271 = vadd.f32 0.0, %v270
    %v272 = vpop.f32.mrb[0].mxu0
    %273 = vmatprep.mubr.f32.mxu0 0.0
    %274 = vmatmul.mubr.f32.gmra.mrb[0].mxu0 %v35
    %v275 = vpop.f32.mrb[0].mxu0
    %v276 = vadd.f32 0.0, %v275
    %v277 = vpop.f32.mrb[0].mxu0
    %278 = vmatprep.mubr.f32.mxu0 0.0
    %279 = vmatmul.mubr.f32.gmra.mrb[0].mxu0 %v38
    %v280 = vpop.f32.mrb[0].mxu0
    %v281 = vadd.f32 0.0, %v280
    %v282 = vpop.f32.mrb[0].mxu0
    %283 = vmatprep.mubr.f32.mxu0 0.0
    %284 = vmatmul.mubr.f32.gmra.mrb[0].mxu0 %v41
    %v285 = vpop.f32.mrb[0].mxu0
    %v286 = vadd.f32 0.0, %v285
    %v287 = vpop.f32.mrb[0].mxu0
    %288 = vmatprep.mubr.f32.mxu0 0.0
    %289 = vmatmul.mubr.f32.gmra.mrb[0].mxu0 %v44
    %v290 = vpop.f32.mrb[0].mxu0
    %v291 = vadd.f32 0.0, %v290
    %v292 = vpop.f32.mrb[0].mxu0
    %293 = vdwg.mxu0
    %v294 = vsel %vm151, %v256, 0.0
    %v295 = vsel %vm151, %v261, 0.0
    %298 = vrot.lane.b32.xlu0 %v276, 1
    %v299 = vpop.permute.xlu0 %298
    %300 = vrot.lane.b32.xlu0 %v281, 1
    %v301 = vpop.permute.xlu0 %300
    %v304 = vsel %vm162, 0.0, %v299
    %v305 = vsel %vm162, 0.0, %v301
    %v306 = vadd.f32 %v294, %v304
    %v307 = vadd.f32 %v295, %v305
    %s308 = scalar_lea.vmem [#allocation2], 16
    %309 = vst.msk [vmem:[%s308] sm:$0xff] %vm167, %v306
    %310 = vst.msk [vmem:[%s308 + $0x8] sm:$0xff] %vm167, %v307
    %v311 = vsel %vm151, %v266, 0.0
    %v312 = vsel %vm151, %v271, 0.0
    %315 = vrot.lane.b32.xlu0 %v286, 1
    %v316 = vpop.permute.xlu0 %315
    %317 = vrot.lane.b32.xlu0 %v291, 1
    %v318 = vpop.permute.xlu0 %317
    %v321 = vsel %vm162, 0.0, %v316
    %v322 = vsel %vm162, 0.0, %v318
    %v323 = vadd.f32 %v311, %v321
    %v324 = vadd.f32 %v312, %v322
    %s325 = scalar_lea.vmem [#allocation2], 48
    %326 = vst.msk [vmem:[%s325] sm:$0xff] %vm167, %v323
    %327 = vst.msk [vmem:[%s325 + $0x8] sm:$0xff] %vm167, %v324
    // Predicated region
    $region10: #{tpu_custom_call.1} parent=1 // pred_check
      _
    $region11: #{tpu_custom_call.1} parent=1 // pred_check_branch
      %329 = sbr.rel (0) target = $region13
    $region12: #{tpu_custom_call.1} parent=1 // pred_region
      %s331 = ssub.s32 1024, 1024
      %332 = vsyncadd [#allocation3], %s331
      %s333 = sshll.u32 [#allocation2], 4
      %s334 = int_to_ptr.vmem [resolvable:$true] %s333
      %339 = dma.vmem_to_hbm [thread:$0]  %s334, 1024, %s2, [#allocation3], 128, 128, 8
    $region13: #{tpu_custom_call.1} parent=1 // pred_fallthru
      _
    // Predicated region
    $region14: #{tpu_custom_call.1} parent=1 // pred_check
      _
    $region15: #{tpu_custom_call.1} parent=1 // pred_check_branch
      %341 = sbr.rel (0) target = $region17
    $region16: #{tpu_custom_call.1} parent=1 // pred_region
      %342 = dma.done [#allocation3], 1024
    $region17: #{tpu_custom_call.1} parent=1 // pred_fallthru
      _
    %343 = vsyncpa [#allocation3], 1

</llo_original>
